<compile_context>
chip_gen: v6e
topology: v6e:2x2x1
jax: 0.10.0
libtpu: 0.0.40
codegen_flags: <defaults>
</compile_context>

<pallas_src>
import jax
import jax.numpy as jnp
from jax import lax
from jax.experimental import pallas as pl
from jax.experimental.pallas import tpu as pltpu


MF_DIM = 8
NN_DIM = 32
PACK_W = 128                       # lane-dense packed-row width
MF_U_OFF = 2 * NN_DIM              # mf_u occupies lanes [64, 72)
MF_I_OFF = MF_U_OFF + MF_DIM       # mf_i occupies lanes [72, 80)
OUT_DIM = 5

ONEHOT_BUDGET_BYTES = 8 * 1024 * 1024   # cap for the in-kernel [TB, nrows] one-hot
FUSED_MAX_ROWS = 2048                    # above this, fall back to XLA-glue gather


def _round_up(x, m):
    return ((x + m - 1) // m) * m


def _ncf_head(x, w1_ref, b1_ref, w2_ref, b2_ref, w3_ref, b3_ref,
              w4mf_ref, w4h_ref, b4_ref):
    """Shared MLP + GMF head on a lane-dense packed slab x: [TB, 128]."""
    # MLP branch.  w1 is zero-padded to [128, 32], so the full lane-dense slab
    # feeds the MXU directly (mf / pad lanes contribute exactly 0).
    h = jnp.dot(x, w1_ref[...], preferred_element_type=jnp.float32) + b1_ref[...]
    h = jnp.maximum(h, 0.0)
    # TODO(synk): Dropout(0.3) skipped (inference / eval semantics -> identity).
    h = jnp.dot(h, w2_ref[...], preferred_element_type=jnp.float32) + b2_ref[...]
    h = jnp.maximum(h, 0.0)
    h = jnp.dot(h, w3_ref[...], preferred_element_type=jnp.float32) + b3_ref[...]
    h = jnp.maximum(h, 0.0)                          # [TB, 8]

    # GMF branch, lane-dense: roll the slab by 8 lanes (XLU slot, ~free) so
    # lanes [72, 80) of (x * roll(x, 8)) hold mf_u * mf_i.  w4_mf is zero-padded
    # to [128, 5] with its nonzero rows at [72, 80), so the dot extracts exactly
    # the GMF contribution without any sub-vreg lane slicing.
    prod = x * pltpu.roll(x, shift=MF_DIM, axis=1)   # [TB, 128]

    # neumf(concat([mf_x, h], -1)) == prod @ W4mf_pad + h @ W4h + b4
    return (jnp.dot(prod, w4mf_ref[...], preferred_element_type=jnp.float32)
            + jnp.dot(h, w4h_ref[...], preferred_element_type=jnp.float32)
            + b4_ref[...])                           # [TB, 5]


def ncf_fused_kernel(u_ref, i_ref, tab_ref, w1_ref, b1_ref, w2_ref, b2_ref,
                     w3_ref, b3_ref, w4mf_ref, w4h_ref, b4_ref, out_ref):
    """Fused gather + forward.  tab_ref is the pinned [nrows, 128] packed table;
    u_ref / i_ref are [TB, 1] row indices into it (item rows already offset)."""
    tb = u_ref.shape[0]
    nrows = tab_ref.shape[0]
    row = lax.broadcasted_iota(jnp.int32, (tb, nrows), 1)
    onehot = jnp.logical_or(row == u_ref[...],
                            row == i_ref[...]).astype(jnp.float32)   # [TB, nrows]
    # Exact gather-and-pack via the (otherwise idle) MXU: the user row and item
    # row have disjoint nonzero lanes, so their sum is the packed concat.
    x = jnp.dot(onehot, tab_ref[...], preferred_element_type=jnp.float32)  # [TB,128]
    out_ref[...] = _ncf_head(x, w1_ref, b1_ref, w2_ref, b2_ref, w3_ref, b3_ref,
                             w4mf_ref, w4h_ref, b4_ref)


def ncf_packed_kernel(x_ref, w1_ref, b1_ref, w2_ref, b2_ref, w3_ref, b3_ref,
                      w4mf_ref, w4h_ref, b4_ref, out_ref):
    """Fallback: x_ref is the pre-packed [TB, 128] slab from XLA-glue gathers."""
    out_ref[...] = _ncf_head(x_ref[...], w1_ref, b1_ref, w2_ref, b2_ref,
                             w3_ref, b3_ref, w4mf_ref, w4h_ref, b4_ref)


def make_params(key, num_users, num_items, nn_emb_dim=32, mf_emb_dim=8):
    ks = jax.random.split(key, 12)

    def linear(kw, kb, fan_in, fan_out):
        bound = 1.0 / jnp.sqrt(fan_in)
        # stored as [in, out] (transposed relative to PyTorch's [out, in])
        w = jax.random.uniform(kw, (fan_in, fan_out), jnp.float32, -bound, bound)
        b = jax.random.uniform(kb, (1, fan_out), jnp.float32, -bound, bound)
        return w, b

    params = {
        "mf_usr_emb":  jax.random.normal(ks[0], (num_users, mf_emb_dim), jnp.float32),
        "mf_item_emb": jax.random.normal(ks[1], (num_items, mf_emb_dim), jnp.float32),
        "nn_usr_emb":  jax.random.normal(ks[2], (num_users, nn_emb_dim), jnp.float32),
        "nn_item_emb": jax.random.normal(ks[3], (num_items, nn_emb_dim), jnp.float32),
    }
    params["w1"], params["b1"] = linear(ks[4],  ks[5],  2 * nn_emb_dim, 32)
    params["w2"], params["b2"] = linear(ks[6],  ks[7],  32, 16)
    params["w3"], params["b3"] = linear(ks[8],  ks[9],  16, 8)
    params["w4"], params["b4"] = linear(ks[10], ks[11], 16, 5)
    return params


def _prep_weights(params):
    """Pad weights to the lane-dense layout the kernel expects.
    Tiny (tens of KiB); hoist into a one-time prep step for production."""
    w1p = jnp.pad(params["w1"], ((0, PACK_W - 2 * NN_DIM), (0, 0)))      # [128, 32]
    w4 = params["w4"]                                                     # [16, 5]
    w4mf_p = jnp.pad(w4[:MF_DIM, :],
                     ((MF_I_OFF, PACK_W - MF_I_OFF - MF_DIM), (0, 0)))    # [128, 5]
    w4h = w4[MF_DIM:, :]                                                  # [8, 5]
    return (w1p, params["b1"], params["w2"], params["b2"],
            params["w3"], params["b3"], w4mf_p, w4h, params["b4"])


def _pack_table(params):
    """One lane-dense packed embedding table.
    Rows [0, num_users): nn_usr at lanes [0,32), mf_usr at [64,72).
    Rows [num_users, num_users+num_items): nn_item at [32,64), mf_item at [72,80).
    Remaining lanes are exactly zero (needed by w1p / roll trick)."""
    nu = params["nn_usr_emb"].shape[0]
    ni = params["nn_item_emb"].shape[0]
    utab = jnp.zeros((nu, PACK_W), jnp.float32)
    utab = utab.at[:, :NN_DIM].set(params["nn_usr_emb"])
    utab = utab.at[:, MF_U_OFF:MF_U_OFF + MF_DIM].set(params["mf_usr_emb"])
    itab = jnp.zeros((ni, PACK_W), jnp.float32)
    itab = itab.at[:, NN_DIM:2 * NN_DIM].set(params["nn_item_emb"])
    itab = itab.at[:, MF_I_OFF:MF_I_OFF + MF_DIM].set(params["mf_item_emb"])
    return jnp.concatenate([utab, itab], axis=0)         # [nu + ni, 128]


def ncf_forward(params, user, item, *, tb=4096, fused_max_rows=FUSED_MAX_ROWS):
    B = int(user.shape[0])
    nu = params["nn_usr_emb"].shape[0]
    ni = params["nn_item_emb"].shape[0]
    nrows = nu + ni
    use_fused = nrows <= fused_max_rows

    weights = _prep_weights(params)

    # ---- batch tiling --------------------------------------------------
    tb = max(8, (int(tb) // 8) * 8)
    if use_fused:
        # Cap the tile so the in-kernel [TB, nrows] f32 one-hot stays within
        # budget (v7x has only 64 MiB VMEM / 32 MiB scoped).
        cap = max(256, (ONEHOT_BUDGET_BYTES // (4 * nrows)) // 8 * 8)
        tb = min(tb, cap)
    rows8 = _round_up(max(B, 1), 8)
    tb_eff = min(tb, rows8)
    # Ensure >=2 grid steps whenever the batch allows it, so the "parallel"
    # batch axis actually feeds both TensorCores on v7x.
    if tb_eff >= rows8 and rows8 >= 16:
        tb_eff = _round_up(-(-rows8 // 2), 8)
    b_pad = _round_up(max(B, 1), tb_eff)
    grid = (b_pad // tb_eff,)
    pad = b_pad - B

    # Weights/biases: full-array blocks pinned to block (0, 0) -> loaded once,
    # kept resident in VMEM across grid steps (no per-step re-DMA).
    w_specs = [pl.BlockSpec(w.shape, lambda b: (0, 0)) for w in weights]
    out_spec = pl.BlockSpec((tb_eff, OUT_DIM), lambda b: (b, 0))
    compiler_params = pltpu.CompilerParams(
        dimension_semantics=("parallel",),      # shard batch tiles over TCs (v7x)
        vmem_limit_bytes=32 * 1024 * 1024)      # scoped-VMEM safe on v5e/v6e/v7x

    user = user.astype(jnp.int32)
    item = item.astype(jnp.int32)

    if use_fused:
        # ---- fused path: tables resident in VMEM, gather in-kernel -------
        table = _pack_table(params)                               # [nrows, 128]
        # Pad the tiny index vectors (not a slab) to the tiled batch size.
        u_idx = jnp.pad(user, (0, pad)).reshape(b_pad, 1)
        i_idx = (jnp.pad(item, (0, pad)) + nu).reshape(b_pad, 1)  # offset rows
        idx_spec = pl.BlockSpec((tb_eff, 1), lambda b: (b, 0))
        tab_spec = pl.BlockSpec(table.shape, lambda b: (0, 0))    # pinned
        out = pl.pallas_call(
            ncf_fused_kernel,
            out_shape=jax.ShapeDtypeStruct((b_pad, OUT_DIM), jnp.float32),
            grid=grid,
            in_specs=[idx_spec, idx_spec, tab_spec] + w_specs,
            out_specs=out_spec,
            compiler_params=compiler_params,
        )(u_idx, i_idx, table, *weights)
    else:
        # ---- fallback: XLA-glue gather + packed slab (one HBM round trip) -
        # Slab is built directly at b_pad rows (pad the index vectors, not the
        # slab) so there is no extra full-slab jnp.pad read+write.
        # TODO(synk): ship this slab as bf16 and/or 80 lanes (~3x fewer HBM
        # bytes) or use per-row DMA gathers; both change numerics / add DMAs.
        user_p = jnp.pad(user, (0, pad))
        item_p = jnp.pad(item, (0, pad))
        nn_u = params["nn_usr_emb"][user_p]                       # [b_pad, 32]
        nn_i = params["nn_item_emb"][item_p]                      # [b_pad, 32]
        mf_u = params["mf_usr_emb"][user_p]                       # [b_pad, 8]
        mf_i = params["mf_item_emb"][item_p]                      # [b_pad, 8]
        pad_w = PACK_W - 2 * NN_DIM - 2 * MF_DIM                  # 48 zero lanes
        packed = jnp.concatenate(
            [nn_u, nn_i, mf_u, mf_i, jnp.zeros((b_pad, pad_w), jnp.float32)],
            axis=-1)                                              # [b_pad, 128]
        x_spec = pl.BlockSpec((tb_eff, PACK_W), lambda b: (b, 0))
        out = pl.pallas_call(
            ncf_packed_kernel,
            out_shape=jax.ShapeDtypeStruct((b_pad, OUT_DIM), jnp.float32),
            grid=grid,
            in_specs=[x_spec] + w_specs,
            out_specs=out_spec,
            compiler_params=compiler_params,
        )(packed, *weights)

    # Matches PyTorch's .squeeze() on the (B, 5) result.
    return jnp.squeeze(out[:B])


if __name__ == "__main__":
    num_users, num_items = 16, 16
    batch = 8

    key = jax.random.PRNGKey(0)
    k_params, k_user, k_item = jax.random.split(key, 3)

    params = make_params(k_params, num_users, num_items)
    user = jax.random.randint(k_user, (batch,), 0, num_users, dtype=jnp.int32)
    item = jax.random.randint(k_item, (batch,), 0, num_items, dtype=jnp.int32)

    # Pure-JAX reference for sanity checks.
    def ref(params, user, item):
        mf_x = params["mf_usr_emb"][user] * params["mf_item_emb"][item]
        x = jnp.concatenate([params["nn_usr_emb"][user],
                             params["nn_item_emb"][item]], axis=-1)
        x = jnp.maximum(x @ params["w1"] + params["b1"], 0.0)
        x = jnp.maximum(x @ params["w2"] + params["b2"], 0.0)
        x = jnp.maximum(x @ params["w3"] + params["b3"], 0.0)
        y = jnp.concatenate([mf_x, x], axis=-1) @ params["w4"] + params["b4"]
        return jnp.squeeze(y)

    # Primary check: fused-gather kernel, single tile.
    out = ncf_forward(params, user, item)
    jax.block_until_ready(out)
    expected = ref(params, user, item)
    assert out.shape == expected.shape
    assert jnp.allclose(out, expected, atol=1e-4, rtol=1e-4)

    # Multi-tile check (grid >= 2, padded last tile) on the fused path.
    k_u2, k_i2 = jax.random.split(jax.random.PRNGKey(1))
    user2 = jax.random.randint(k_u2, (40,), 0, num_users, dtype=jnp.int32)
    item2 = jax.random.randint(k_i2, (40,), 0, num_items, dtype=jnp.int32)
    out2 = ncf_forward(params, user2, item2)
    jax.block_until_ready(out2)
    assert jnp.allclose(out2, ref(params, user2, item2), atol=1e-4, rtol=1e-4)

    # Fallback (XLA-glue gather + packed slab) path check.
    out3 = ncf_forward(params, user2, item2, fused_max_rows=0)
    jax.block_until_ready(out3)
    assert jnp.allclose(out3, ref(params, user2, item2), atol=1e-4, rtol=1e-4)

    print("KERNEL_OK")
</pallas_src>

<mosaic_0001>
module attributes {stable_mosaic.version = 11 : i64} {
  func.func @ncf_fused_kernel(%arg0: i32, %arg1: memref<8x1xi32, #tpu.memory_space<vmem>>, %arg2: memref<8x1xi32, #tpu.memory_space<vmem>>, %arg3: memref<32x128xf32, #tpu.memory_space<vmem>>, %arg4: memref<128x32xf32, #tpu.memory_space<vmem>>, %arg5: memref<1x32xf32, #tpu.memory_space<vmem>>, %arg6: memref<32x16xf32, #tpu.memory_space<vmem>>, %arg7: memref<1x16xf32, #tpu.memory_space<vmem>>, %arg8: memref<16x8xf32, #tpu.memory_space<vmem>>, %arg9: memref<1x8xf32, #tpu.memory_space<vmem>>, %arg10: memref<128x5xf32, #tpu.memory_space<vmem>>, %arg11: memref<8x5xf32, #tpu.memory_space<vmem>>, %arg12: memref<1x5xf32, #tpu.memory_space<vmem>>, %arg13: memref<8x5xf32, #tpu.memory_space<vmem>>) attributes {dimension_semantics = [#tpu.dimension_semantics<parallel>], iteration_bounds = array<i64: 1>, scalar_prefetch = 0 : i64, scratch_operands = 0 : i64, tpu.core_type = #tpu.core_type<tc>, window_params = [{transform_indices = @transform_0, window_bounds = array<i64: 8, 1>}, {transform_indices = @transform_1, window_bounds = array<i64: 8, 1>}, {pipeline_mode = #tpu.pipeline_mode<synchronous>, transform_indices = @transform_2, window_bounds = array<i64: 32, 128>}, {pipeline_mode = #tpu.pipeline_mode<synchronous>, transform_indices = @transform_3, window_bounds = array<i64: 128, 32>}, {pipeline_mode = #tpu.pipeline_mode<synchronous>, transform_indices = @transform_4, window_bounds = array<i64: 1, 32>}, {pipeline_mode = #tpu.pipeline_mode<synchronous>, transform_indices = @transform_5, window_bounds = array<i64: 32, 16>}, {pipeline_mode = #tpu.pipeline_mode<synchronous>, transform_indices = @transform_6, window_bounds = array<i64: 1, 16>}, {pipeline_mode = #tpu.pipeline_mode<synchronous>, transform_indices = @transform_7, window_bounds = array<i64: 16, 8>}, {pipeline_mode = #tpu.pipeline_mode<synchronous>, transform_indices = @transform_8, window_bounds = array<i64: 1, 8>}, {pipeline_mode = #tpu.pipeline_mode<synchronous>, transform_indices = @transform_9, window_bounds = array<i64: 128, 5>}, {pipeline_mode = #tpu.pipeline_mode<synchronous>, transform_indices = @transform_10, window_bounds = array<i64: 8, 5>}, {pipeline_mode = #tpu.pipeline_mode<synchronous>, transform_indices = @transform_11, window_bounds = array<i64: 1, 5>}, {transform_indices = @transform_12, window_bounds = array<i64: 8, 5>}]} {
    %0 = tpu.iota {dimensions = array<i32: 1>} : vector<8x32xi32>
    %c0 = arith.constant 0 : index
    %c0_0 = arith.constant 0 : index
    %1 = vector.load %arg1[%c0, %c0_0] : memref<8x1xi32, #tpu.memory_space<vmem>>, vector<8x1xi32>
    %2 = vector.broadcast %1 : vector<8x1xi32> to vector<8x32xi32>
    %3 = arith.cmpi eq, %0, %2 : vector<8x32xi32>
    %c0_1 = arith.constant 0 : index
    %c0_2 = arith.constant 0 : index
    %4 = vector.load %arg2[%c0_1, %c0_2] : memref<8x1xi32, #tpu.memory_space<vmem>>, vector<8x1xi32>
    %5 = vector.broadcast %4 : vector<8x1xi32> to vector<8x32xi32>
    %6 = arith.cmpi eq, %0, %5 : vector<8x32xi32>
    %7 = arith.ori %3, %6 : vector<8x32xi1>
    %8 = arith.extui %7 : vector<8x32xi1> to vector<8x32xi32>
    %9 = arith.sitofp %8 : vector<8x32xi32> to vector<8x32xf32>
    %c0_3 = arith.constant 0 : index
    %c0_4 = arith.constant 0 : index
    %10 = vector.load %arg3[%c0_3, %c0_4] : memref<32x128xf32, #tpu.memory_space<vmem>>, vector<32x128xf32>
    %cst = arith.constant dense<0.000000e+00> : vector<8x128xf32>
    %11 = tpu.matmul %9, %10, %cst {dimension_numbers = #tpu.dot_dimension_numbers<[1], [0], [0], [1], [0, 0, 1, 1], [], []>} : vector<8x32xf32>, vector<32x128xf32>, vector<8x128xf32> -> vector<8x128xf32>
    %c0_5 = arith.constant 0 : index
    %c0_6 = arith.constant 0 : index
    %12 = vector.load %arg4[%c0_5, %c0_6] : memref<128x32xf32, #tpu.memory_space<vmem>>, vector<128x32xf32>
    %cst_7 = arith.constant dense<0.000000e+00> : vector<8x32xf32>
    %13 = tpu.matmul %11, %12, %cst_7 {dimension_numbers = #tpu.dot_dimension_numbers<[1], [0], [0], [1], [0, 0, 1, 1], [], []>} : vector<8x128xf32>, vector<128x32xf32>, vector<8x32xf32> -> vector<8x32xf32>
    %c0_8 = arith.constant 0 : index
    %c0_9 = arith.constant 0 : index
    %14 = vector.load %arg5[%c0_8, %c0_9] : memref<1x32xf32, #tpu.memory_space<vmem>>, vector<1x32xf32>
    %15 = vector.broadcast %14 : vector<1x32xf32> to vector<8x32xf32>
    %16 = arith.addf %13, %15 : vector<8x32xf32>
    %cst_10 = arith.constant 0.000000e+00 : f32
    %17 = vector.broadcast %cst_10 : f32 to vector<8x32xf32>
    %18 = arith.maximumf %16, %17 : vector<8x32xf32>
    %c0_11 = arith.constant 0 : index
    %c0_12 = arith.constant 0 : index
    %19 = vector.load %arg6[%c0_11, %c0_12] : memref<32x16xf32, #tpu.memory_space<vmem>>, vector<32x16xf32>
    %cst_13 = arith.constant dense<0.000000e+00> : vector<8x16xf32>
    %20 = tpu.matmul %18, %19, %cst_13 {dimension_numbers = #tpu.dot_dimension_numbers<[1], [0], [0], [1], [0, 0, 1, 1], [], []>} : vector<8x32xf32>, vector<32x16xf32>, vector<8x16xf32> -> vector<8x16xf32>
    %c0_14 = arith.constant 0 : index
    %c0_15 = arith.constant 0 : index
    %21 = vector.load %arg7[%c0_14, %c0_15] : memref<1x16xf32, #tpu.memory_space<vmem>>, vector<1x16xf32>
    %22 = vector.broadcast %21 : vector<1x16xf32> to vector<8x16xf32>
    %23 = arith.addf %20, %22 : vector<8x16xf32>
    %cst_16 = arith.constant 0.000000e+00 : f32
    %24 = vector.broadcast %cst_16 : f32 to vector<8x16xf32>
    %25 = arith.maximumf %23, %24 : vector<8x16xf32>
    %c0_17 = arith.constant 0 : index
    %c0_18 = arith.constant 0 : index
    %26 = vector.load %arg8[%c0_17, %c0_18] : memref<16x8xf32, #tpu.memory_space<vmem>>, vector<16x8xf32>
    %cst_19 = arith.constant dense<0.000000e+00> : vector<8x8xf32>
    %27 = tpu.matmul %25, %26, %cst_19 {dimension_numbers = #tpu.dot_dimension_numbers<[1], [0], [0], [1], [0, 0, 1, 1], [], []>} : vector<8x16xf32>, vector<16x8xf32>, vector<8x8xf32> -> vector<8x8xf32>
    %c0_20 = arith.constant 0 : index
    %c0_21 = arith.constant 0 : index
    %28 = vector.load %arg9[%c0_20, %c0_21] : memref<1x8xf32, #tpu.memory_space<vmem>>, vector<1x8xf32>
    %29 = vector.broadcast %28 : vector<1x8xf32> to vector<8x8xf32>
    %30 = arith.addf %27, %29 : vector<8x8xf32>
    %cst_22 = arith.constant 0.000000e+00 : f32
    %31 = vector.broadcast %cst_22 : f32 to vector<8x8xf32>
    %32 = arith.maximumf %30, %31 : vector<8x8xf32>
    %c8_i32 = arith.constant 8 : i32
    %33 = tpu.dynamic_rotate %11 by %c8_i32 dim 1 : vector<8x128xf32>, i32 -> vector<8x128xf32>
    %34 = arith.mulf %11, %33 : vector<8x128xf32>
    %c0_23 = arith.constant 0 : index
    %c0_24 = arith.constant 0 : index
    %35 = vector.load %arg10[%c0_23, %c0_24] : memref<128x5xf32, #tpu.memory_space<vmem>>, vector<128x5xf32>
    %cst_25 = arith.constant dense<0.000000e+00> : vector<8x5xf32>
    %36 = tpu.matmul %34, %35, %cst_25 {dimension_numbers = #tpu.dot_dimension_numbers<[1], [0], [0], [1], [0, 0, 1, 1], [], []>} : vector<8x128xf32>, vector<128x5xf32>, vector<8x5xf32> -> vector<8x5xf32>
    %c0_26 = arith.constant 0 : index
    %c0_27 = arith.constant 0 : index
    %37 = vector.load %arg11[%c0_26, %c0_27] : memref<8x5xf32, #tpu.memory_space<vmem>>, vector<8x5xf32>
    %cst_28 = arith.constant dense<0.000000e+00> : vector<8x5xf32>
    %38 = tpu.matmul %32, %37, %cst_28 {dimension_numbers = #tpu.dot_dimension_numbers<[1], [0], [0], [1], [0, 0, 1, 1], [], []>} : vector<8x8xf32>, vector<8x5xf32>, vector<8x5xf32> -> vector<8x5xf32>
    %39 = arith.addf %36, %38 : vector<8x5xf32>
    %c0_29 = arith.constant 0 : index
    %c0_30 = arith.constant 0 : index
    %40 = vector.load %arg12[%c0_29, %c0_30] : memref<1x5xf32, #tpu.memory_space<vmem>>, vector<1x5xf32>
    %41 = vector.broadcast %40 : vector<1x5xf32> to vector<8x5xf32>
    %42 = arith.addf %39, %41 : vector<8x5xf32>
    %c0_31 = arith.constant 0 : index
    %c0_32 = arith.constant 0 : index
    %43 = vector.load %arg13[%c0_31, %c0_32] : memref<8x5xf32, #tpu.memory_space<vmem>>, vector<8x5xf32>
    tpu.vector_store %arg13[%c0_31, %c0_32], %42 {strides = array<i32>} : memref<8x5xf32, #tpu.memory_space<vmem>>, vector<8x5xf32>,
    return
  }
  func.func @transform_0(%arg0: i32) -> (i32, i32) {
    %c0_i32 = arith.constant 0 : i32
    %c0_i32_0 = arith.constant 0 : i32
    return %arg0, %c0_i32 : i32, i32
  }
  func.func @transform_1(%arg0: i32) -> (i32, i32) {
    %c0_i32 = arith.constant 0 : i32
    %c0_i32_0 = arith.constant 0 : i32
    return %arg0, %c0_i32 : i32, i32
  }
  func.func @transform_2(%arg0: i32) -> (i32, i32) {
    %c0_i32 = arith.constant 0 : i32
    %c0_i32_0 = arith.constant 0 : i32
    %c0_i32_1 = arith.constant 0 : i32
    return %c0_i32, %c0_i32_0 : i32, i32
  }
  func.func @transform_3(%arg0: i32) -> (i32, i32) {
    %c0_i32 = arith.constant 0 : i32
    %c0_i32_0 = arith.constant 0 : i32
    %c0_i32_1 = arith.constant 0 : i32
    return %c0_i32, %c0_i32_0 : i32, i32
  }
  func.func @transform_4(%arg0: i32) -> (i32, i32) {
    %c0_i32 = arith.constant 0 : i32
    %c0_i32_0 = arith.constant 0 : i32
    %c0_i32_1 = arith.constant 0 : i32
    return %c0_i32, %c0_i32_0 : i32, i32
  }
  func.func @transform_5(%arg0: i32) -> (i32, i32) {
    %c0_i32 = arith.constant 0 : i32
    %c0_i32_0 = arith.constant 0 : i32
    %c0_i32_1 = arith.constant 0 : i32
    return %c0_i32, %c0_i32_0 : i32, i32
  }
  func.func @transform_6(%arg0: i32) -> (i32, i32) {
    %c0_i32 = arith.constant 0 : i32
    %c0_i32_0 = arith.constant 0 : i32
    %c0_i32_1 = arith.constant 0 : i32
    return %c0_i32, %c0_i32_0 : i32, i32
  }
  func.func @transform_7(%arg0: i32) -> (i32, i32) {
    %c0_i32 = arith.constant 0 : i32
    %c0_i32_0 = arith.constant 0 : i32
    %c0_i32_1 = arith.constant 0 : i32
    return %c0_i32, %c0_i32_0 : i32, i32
  }
  func.func @transform_8(%arg0: i32) -> (i32, i32) {
    %c0_i32 = arith.constant 0 : i32
    %c0_i32_0 = arith.constant 0 : i32
    %c0_i32_1 = arith.constant 0 : i32
    return %c0_i32, %c0_i32_0 : i32, i32
  }
  func.func @transform_9(%arg0: i32) -> (i32, i32) {
    %c0_i32 = arith.constant 0 : i32
    %c0_i32_0 = arith.constant 0 : i32
    %c0_i32_1 = arith.constant 0 : i32
    return %c0_i32, %c0_i32_0 : i32, i32
  }
  func.func @transform_10(%arg0: i32) -> (i32, i32) {
    %c0_i32 = arith.constant 0 : i32
    %c0_i32_0 = arith.constant 0 : i32
    %c0_i32_1 = arith.constant 0 : i32
    return %c0_i32, %c0_i32_0 : i32, i32
  }
  func.func @transform_11(%arg0: i32) -> (i32, i32) {
    %c0_i32 = arith.constant 0 : i32
    %c0_i32_0 = arith.constant 0 : i32
    %c0_i32_1 = arith.constant 0 : i32
    return %c0_i32, %c0_i32_0 : i32, i32
  }
  func.func @transform_12(%arg0: i32) -> (i32, i32) {
    %c0_i32 = arith.constant 0 : i32
    %c0_i32_0 = arith.constant 0 : i32
    return %arg0, %c0_i32 : i32, i32
  }
}

</mosaic_0001>

<llo_original>
// kernel: tpu_custom_call.1
$region0: #{tpu_custom_call.1}
  #allocation0 [shape = 'u32[]', space=smem, size = 0x4, offset = 0x4, fixed_abs, tag = 'smem constant byte address 0x4 - core index']
  #allocation1 [shape = 'u32[144,128]{1,0:T(1,128)}', space=vmem, size = 0x12000, scoped, tag = 'internal scratch']
  %s0 = inlined_call_operand.vmem [shape: s32[8,1], index: 0, kind: input, shape index: {}]
  %s1 = inlined_call_operand.vmem [shape: s32[8,1], index: 1, kind: input, shape index: {}]
  %s2 = inlined_call_operand.vmem [shape: f32[32,128], index: 2, kind: input, shape index: {}]
  %s3 = inlined_call_operand.vmem [shape: f32[128,32], index: 3, kind: input, shape index: {}]
  %s4 = inlined_call_operand.vmem [shape: f32[1,32], index: 4, kind: input, shape index: {}]
  %s5 = inlined_call_operand.vmem [shape: f32[32,16], index: 5, kind: input, shape index: {}]
  %s6 = inlined_call_operand.vmem [shape: f32[1,16], index: 6, kind: input, shape index: {}]
  %s7 = inlined_call_operand.vmem [shape: f32[16,8], index: 7, kind: input, shape index: {}]
  %s8 = inlined_call_operand.vmem [shape: f32[1,8], index: 8, kind: input, shape index: {}]
  %s9 = inlined_call_operand.vmem [shape: f32[128,5], index: 9, kind: input, shape index: {}]
  %s10 = inlined_call_operand.vmem [shape: f32[8,5], index: 10, kind: input, shape index: {}]
  %s11 = inlined_call_operand.vmem [shape: f32[1,5], index: 11, kind: input, shape index: {}]
  %s12 = inlined_call_operand.hbm [shape: f32[8,5], index: 12, kind: output, shape index: {}]
  %s13 = sld [smem:[#allocation0]]
  $region58: #{tpu_custom_call.1} parent=0
    _
  %s15 = ssub.s32 1, %s13
  %s16 = scalar_select 0, %s15, %s13
  $region1: #{tpu_custom_call.1} parent=0
    #allocation2 [shape = 'u8[4096]{0}', space=vmem, size = 0x1000, scoped, tag = 'output window, operand 0, single buffered']
    #allocation3 [shape = 's32[1]{0}', space=sflag, size = 0x4, scoped, tag = 'scoped memory for tpu_custom_call.1']
    %17 = vsyncpa [#allocation3], 0
    // Predicated region
    $region2: #{tpu_custom_call.1} parent=1 // pred_check
      _
    $region3: #{tpu_custom_call.1} parent=1 // pred_check_branch
      %19 = sbr.rel (0) target = $region5
    $region4: #{tpu_custom_call.1} parent=1 // pred_region
      _
    $region5: #{tpu_custom_call.1} parent=1 // pred_fallthru
      _
    // Predicated region
    $region6: #{tpu_custom_call.1} parent=1 // pred_check
      _
    $region7: #{tpu_custom_call.1} parent=1 // pred_check_branch
      %21 = sbr.rel (0) target = $region9
    $region8: #{tpu_custom_call.1} parent=1 // pred_region
      _
    $region9: #{tpu_custom_call.1} parent=1 // pred_fallthru
      _
    // Predicated region
    $region10: #{tpu_custom_call.1} parent=1 // pred_check
      _
    $region11: #{tpu_custom_call.1} parent=1 // pred_check_branch
      %23 = sbr.rel (0) target = $region13
    $region12: #{tpu_custom_call.1} parent=1 // pred_region
      _
    $region13: #{tpu_custom_call.1} parent=1 // pred_fallthru
      _
    // Predicated region
    $region14: #{tpu_custom_call.1} parent=1 // pred_check
      _
    $region15: #{tpu_custom_call.1} parent=1 // pred_check_branch
      %25 = sbr.rel (0) target = $region17
    $region16: #{tpu_custom_call.1} parent=1 // pred_region
      _
    $region17: #{tpu_custom_call.1} parent=1 // pred_fallthru
      _
    // Predicated region
    $region18: #{tpu_custom_call.1} parent=1 // pred_check
      _
    $region19: #{tpu_custom_call.1} parent=1 // pred_check_branch
      %27 = sbr.rel (0) target = $region21
    $region20: #{tpu_custom_call.1} parent=1 // pred_region
      _
    $region21: #{tpu_custom_call.1} parent=1 // pred_fallthru
      _
    // Predicated region
    $region22: #{tpu_custom_call.1} parent=1 // pred_check
      _
    $region23: #{tpu_custom_call.1} parent=1 // pred_check_branch
      %29 = sbr.rel (0) target = $region25
    $region24: #{tpu_custom_call.1} parent=1 // pred_region
      _
    $region25: #{tpu_custom_call.1} parent=1 // pred_fallthru
      _
    // Predicated region
    $region26: #{tpu_custom_call.1} parent=1 // pred_check
      _
    $region27: #{tpu_custom_call.1} parent=1 // pred_check_branch
      %31 = sbr.rel (0) target = $region29
    $region28: #{tpu_custom_call.1} parent=1 // pred_region
      _
    $region29: #{tpu_custom_call.1} parent=1 // pred_fallthru
      _
    // Predicated region
    $region30: #{tpu_custom_call.1} parent=1 // pred_check
      _
    $region31: #{tpu_custom_call.1} parent=1 // pred_check_branch
      %33 = sbr.rel (0) target = $region33
    $region32: #{tpu_custom_call.1} parent=1 // pred_region
      _
    $region33: #{tpu_custom_call.1} parent=1 // pred_fallthru
      _
    // Predicated region
    $region34: #{tpu_custom_call.1} parent=1 // pred_check
      _
    $region35: #{tpu_custom_call.1} parent=1 // pred_check_branch
      %35 = sbr.rel (0) target = $region37
    $region36: #{tpu_custom_call.1} parent=1 // pred_region
      _
    $region37: #{tpu_custom_call.1} parent=1 // pred_fallthru
      _
    // Predicated region
    $region38: #{tpu_custom_call.1} parent=1 // pred_check
      _
    $region39: #{tpu_custom_call.1} parent=1 // pred_check_branch
      %37 = sbr.rel (0) target = $region41
    $region40: #{tpu_custom_call.1} parent=1 // pred_region
      _
    $region41: #{tpu_custom_call.1} parent=1 // pred_fallthru
      _
    // Predicated region
    $region42: #{tpu_custom_call.1} parent=1 // pred_check
      _
    $region43: #{tpu_custom_call.1} parent=1 // pred_check_branch
      %39 = sbr.rel (0) target = $region45
    $region44: #{tpu_custom_call.1} parent=1 // pred_region
      _
    $region45: #{tpu_custom_call.1} parent=1 // pred_fallthru
      _
    // Predicated region
    $region46: #{tpu_custom_call.1} parent=1 // pred_check
      _
    $region47: #{tpu_custom_call.1} parent=1 // pred_check_branch
      %41 = sbr.rel (0) target = $region49
    $region48: #{tpu_custom_call.1} parent=1 // pred_region
      _
    $region49: #{tpu_custom_call.1} parent=1 // pred_fallthru
      _
    %v42 = vlaneseq
    %v43 = vand.u32 %v42, 127
    %v44 = vld [vmem:[%s0] sm:$0xff]
    %45 = vset.pattern.permute.xlu0 0
    %46 = vperm.xlu0 %45, %v44
    %v47 = vpop.permute.xlu0 %46
    %vm48 = vcmp.eq.s32.totalorder %v43, %v47
    %v49 = vld [vmem:[%s1] sm:$0xff]
    %50 = vset.pattern.permute.xlu0 0
    %51 = vperm.xlu0 %50, %v49
    %v52 = vpop.permute.xlu0 %51
    %vm53 = vcmp.eq.s32.totalorder %v43, %v52
    %vm54 = vmor %vm48, %vm53
    %v55 = vsel %vm54, 1, 0
    %v56 = vcvt.s32.f32 %v55
    %v57 = vld [vmem:[%s2] sm:$0xff]
    %v58 = vld [vmem:[%s2 + $0x8] sm:$0xff]
    %v59 = vld [vmem:[%s2 + $0x10] sm:$0xff]
    %v60 = vld [vmem:[%s2 + $0x18] sm:$0xff]
    %vm61 = vcmask 261120
    %v63 = vsel %vm61, %v56, 0
    %65 = vmatprep.subr.mxu0 0.0
    %66 = vmatpush1.msra.mxu0 0.0
    %67 = vmatprep.subr.mxu0 0.0
    %68 = vmatpush1.msra.mxu0 0.0
    %69 = vmatprep.subr.mxu0 0.0
    %70 = vmatpush1.msra.mxu0 0.0
    %71 = vmatprep.subr.mxu0 0.0
    %72 = vmatpush1.msra.mxu0 0.0
    %73 = vmatprep.subr.mxu0 0.0
    %74 = vmatpush1.msra.mxu0 0.0
    %75 = vmatprep.subr.mxu0 0.0
    %76 = vmatpush1.msra.mxu0 0.0
    %77 = vmatprep.subr.mxu0 0.0
    %78 = vmatpush1.msra.mxu0 0.0
    %79 = vmatprep.subr.mxu0 0.0
    %80 = vmatpush1.msra.mxu0 0.0
    %81 = vmatprep.subr.mxu0 0.0
    %82 = vmatpush1.msra.mxu0 0.0
    %83 = vmatprep.subr.mxu0 0.0
    %84 = vmatpush1.msra.mxu0 0.0
    %85 = vmatprep.subr.mxu0 0.0
    %86 = vmatpush1.msra.mxu0 0.0
    %87 = vmatprep.subr.mxu0 0.0
    %88 = vmatpush1.msra.mxu0 0.0
    %89 = vmatprep.subr.mxu0 0.0
    %90 = vmatpush1.msra.mxu0 %v60
    %91 = vmatprep.subr.mxu0 0.0
    %92 = vmatpush1.msra.mxu0 %v59
    %93 = vmatprep.subr.mxu0 0.0
    %94 = vmatpush1.msra.mxu0 %v58
    %95 = vmatprep.subr.mxu0 0.0
    %96 = vmatpush1.msra.mxu0 %v57
    %97 = vmatprep.subr.mxu0 0.0
    %98 = vmatpush2.msra.mxu0 0.0
    %99 = vmatprep.subr.mxu0 0.0
    %100 = vmatpush2.msra.mxu0 0.0
    %101 = vmatprep.subr.mxu0 0.0
    %102 = vmatpush2.msra.mxu0 0.0
    %103 = vmatprep.subr.mxu0 0.0
    %104 = vmatpush2.msra.mxu0 0.0
    %105 = vmatprep.subr.mxu0 0.0
    %106 = vmatpush2.msra.mxu0 0.0
    %107 = vmatprep.subr.mxu0 0.0
    %108 = vmatpush2.msra.mxu0 0.0
    %109 = vmatprep.subr.mxu0 0.0
    %110 = vmatpush2.msra.mxu0 0.0
    %111 = vmatprep.subr.mxu0 0.0
    %112 = vmatpush2.msra.mxu0 0.0
    %113 = vmatprep.subr.mxu0 0.0
    %114 = vmatpush2.msra.mxu0 0.0
    %115 = vmatprep.subr.mxu0 0.0
    %116 = vmatpush2.msra.mxu0 0.0
    %117 = vmatprep.subr.mxu0 0.0
    %118 = vmatpush2.msra.mxu0 0.0
    %119 = vmatprep.subr.mxu0 0.0
    %120 = vmatpush2.msra.mxu0 0.0
    %121 = vmatprep.subr.mxu0 0.0
    %122 = vmatpush2.msra.mxu0 0.0
    %123 = vmatprep.subr.mxu0 0.0
    %124 = vmatpush2.msra.mxu0 0.0
    %125 = vmatprep.subr.mxu0 0.0
    %126 = vmatpush2.msra.mxu0 0.0
    %127 = vmatprep.subr.mxu0 0.0
    %128 = vmatpush2.msra.mxu0 0.0
    %129 = vmatprep.mubr.f32.mxu0 0.0
    %130 = vmatmul.mubr.f32.gmra.mxu0 %v63
    %v131 = vpop.f32.mrf.mxu0
    %v132 = vadd.f32 0.0, %v131
    %v133 = vpop.f32.mrf.mxu0
    %134 = vdwg.mxu0
    %v135 = vld [vmem:[%s3] sm:$0xff]
    %v136 = vld [vmem:[%s3 + $0x8] sm:$0xff]
    %v137 = vld [vmem:[%s3 + $0x10] sm:$0xff]
    %v138 = vld [vmem:[%s3 + $0x18] sm:$0xff]
    %v139 = vld [vmem:[%s3 + $0x20] sm:$0xff]
    %v140 = vld [vmem:[%s3 + $0x28] sm:$0xff]
    %v141 = vld [vmem:[%s3 + $0x30] sm:$0xff]
    %v142 = vld [vmem:[%s3 + $0x38] sm:$0xff]
    %v143 = vld [vmem:[%s3 + $0x40] sm:$0xff]
    %v144 = vld [vmem:[%s3 + $0x48] sm:$0xff]
    %v145 = vld [vmem:[%s3 + $0x50] sm:$0xff]
    %v146 = vld [vmem:[%s3 + $0x58] sm:$0xff]
    %v147 = vld [vmem:[%s3 + $0x60] sm:$0xff]
    %v148 = vld [vmem:[%s3 + $0x68] sm:$0xff]
    %v149 = vld [vmem:[%s3 + $0x70] sm:$0xff]
    %v150 = vld [vmem:[%s3 + $0x78] sm:$0xff]
    %v151 = vld [vmem:[%s4] sm:$0x1]
    %v153 = vlaneseq
    %v154 = vshrl.u32 %v153, 7
    %v155 = vsub.s32 0, %v154
    %v156 = vrot.slane %v151, %v155
    %158 = vmatprep.subr.mxu0 0.0
    %159 = vmatpush1.msra.mxu0 %v150
    %160 = vmatprep.subr.mxu0 0.0
    %161 = vmatpush1.msra.mxu0 %v149
    %162 = vmatprep.subr.mxu0 0.0
    %163 = vmatpush1.msra.mxu0 %v148
    %164 = vmatprep.subr.mxu0 0.0
    %165 = vmatpush1.msra.mxu0 %v147
    %166 = vmatprep.subr.mxu0 0.0
    %167 = vmatpush1.msra.mxu0 %v146
    %168 = vmatprep.subr.mxu0 0.0
    %169 = vmatpush1.msra.mxu0 %v145
    %170 = vmatprep.subr.mxu0 0.0
    %171 = vmatpush1.msra.mxu0 %v144
    %172 = vmatprep.subr.mxu0 0.0
    %173 = vmatpush1.msra.mxu0 %v143
    %174 = vmatprep.subr.mxu0 0.0
    %175 = vmatpush1.msra.mxu0 %v142
    %176 = vmatprep.subr.mxu0 0.0
    %177 = vmatpush1.msra.mxu0 %v141
    %178 = vmatprep.subr.mxu0 0.0
    %179 = vmatpush1.msra.mxu0 %v140
    %180 = vmatprep.subr.mxu0 0.0
    %181 = vmatpush1.msra.mxu0 %v139
    %182 = vmatprep.subr.mxu0 0.0
    %183 = vmatpush1.msra.mxu0 %v138
    %184 = vmatprep.subr.mxu0 0.0
    %185 = vmatpush1.msra.mxu0 %v137
    %186 = vmatprep.subr.mxu0 0.0
    %187 = vmatpush1.msra.mxu0 %v136
    %188 = vmatprep.subr.mxu0 0.0
    %189 = vmatpush1.msra.mxu0 %v135
    %190 = vmatprep.subr.mxu0 0.0
    %191 = vmatpush2.msra.mxu0 0.0
    %192 = vmatprep.subr.mxu0 0.0
    %193 = vmatpush2.msra.mxu0 0.0
    %194 = vmatprep.subr.mxu0 0.0
    %195 = vmatpush2.msra.mxu0 0.0
    %196 = vmatprep.subr.mxu0 0.0
    %197 = vmatpush2.msra.mxu0 0.0
    %198 = vmatprep.subr.mxu0 0.0
    %199 = vmatpush2.msra.mxu0 0.0
    %200 = vmatprep.subr.mxu0 0.0
    %201 = vmatpush2.msra.mxu0 0.0
    %202 = vmatprep.subr.mxu0 0.0
    %203 = vmatpush2.msra.mxu0 0.0
    %204 = vmatprep.subr.mxu0 0.0
    %205 = vmatpush2.msra.mxu0 0.0
    %206 = vmatprep.subr.mxu0 0.0
    %207 = vmatpush2.msra.mxu0 0.0
    %208 = vmatprep.subr.mxu0 0.0
    %209 = vmatpush2.msra.mxu0 0.0
    %210 = vmatprep.subr.mxu0 0.0
    %211 = vmatpush2.msra.mxu0 0.0
    %212 = vmatprep.subr.mxu0 0.0
    %213 = vmatpush2.msra.mxu0 0.0
    %214 = vmatprep.subr.mxu0 0.0
    %215 = vmatpush2.msra.mxu0 0.0
    %216 = vmatprep.subr.mxu0 0.0
    %217 = vmatpush2.msra.mxu0 0.0
    %218 = vmatprep.subr.mxu0 0.0
    %219 = vmatpush2.msra.mxu0 0.0
    %220 = vmatprep.subr.mxu0 0.0
    %221 = vmatpush2.msra.mxu0 0.0
    %222 = vmatprep.mubr.f32.mxu0 0.0
    %223 = vmatmul.mubr.f32.gmra.mxu0 %v132
    %v224 = vpop.f32.mrf.mxu0
    %v225 = vadd.f32 %v156, %v224
    %v226 = vpop.f32.mrf.mxu0
    %227 = vdwg.mxu0
    %v228 = vmax.f32 %v225, 0.0
    %v229 = vld [vmem:[%s5] sm:$0xff]
    %v230 = vld [vmem:[%s5 + $0x8] sm:$0xff]
    %v231 = vld [vmem:[%s5 + $0x10] sm:$0xff]
    %v232 = vld [vmem:[%s5 + $0x18] sm:$0xff]
    %v233 = vld [vmem:[%s6] sm:$0x1]
    %v235 = vlaneseq
    %v236 = vshrl.u32 %v235, 7
    %v237 = vsub.s32 0, %v236
    %v238 = vrot.slane %v233, %v237
    %v241 = vsel %vm61, %v228, 0
    %243 = vmatprep.subr.mxu0 0.0
    %244 = vmatpush1.msra.mxu0 0.0
    %245 = vmatprep.subr.mxu0 0.0
    %246 = vmatpush1.msra.mxu0 0.0
    %247 = vmatprep.subr.mxu0 0.0
    %248 = vmatpush1.msra.mxu0 0.0
    %249 = vmatprep.subr.mxu0 0.0
    %250 = vmatpush1.msra.mxu0 0.0
    %251 = vmatprep.subr.mxu0 0.0
    %252 = vmatpush1.msra.mxu0 0.0
    %253 = vmatprep.subr.mxu0 0.0
    %254 = vmatpush1.msra.mxu0 0.0
    %255 = vmatprep.subr.mxu0 0.0
    %256 = vmatpush1.msra.mxu0 0.0
    %257 = vmatprep.subr.mxu0 0.0
    %258 = vmatpush1.msra.mxu0 0.0
    %259 = vmatprep.subr.mxu0 0.0
    %260 = vmatpush1.msra.mxu0 0.0
    %261 = vmatprep.subr.mxu0 0.0
    %262 = vmatpush1.msra.mxu0 0.0
    %263 = vmatprep.subr.mxu0 0.0
    %264 = vmatpush1.msra.mxu0 0.0
    %265 = vmatprep.subr.mxu0 0.0
    %266 = vmatpush1.msra.mxu0 0.0
    %267 = vmatprep.subr.mxu0 0.0
    %268 = vmatpush1.msra.mxu0 %v232
    %269 = vmatprep.subr.mxu0 0.0
    %270 = vmatpush1.msra.mxu0 %v231
    %271 = vmatprep.subr.mxu0 0.0
    %272 = vmatpush1.msra.mxu0 %v230
    %273 = vmatprep.subr.mxu0 0.0
    %274 = vmatpush1.msra.mxu0 %v229
    %275 = vmatprep.subr.mxu0 0.0
    %276 = vmatpush2.msra.mxu0 0.0
    %277 = vmatprep.subr.mxu0 0.0
    %278 = vmatpush2.msra.mxu0 0.0
    %279 = vmatprep.subr.mxu0 0.0
    %280 = vmatpush2.msra.mxu0 0.0
    %281 = vmatprep.subr.mxu0 0.0
    %282 = vmatpush2.msra.mxu0 0.0
    %283 = vmatprep.subr.mxu0 0.0
    %284 = vmatpush2.msra.mxu0 0.0
    %285 = vmatprep.subr.mxu0 0.0
    %286 = vmatpush2.msra.mxu0 0.0
    %287 = vmatprep.subr.mxu0 0.0
    %288 = vmatpush2.msra.mxu0 0.0
    %289 = vmatprep.subr.mxu0 0.0
    %290 = vmatpush2.msra.mxu0 0.0
    %291 = vmatprep.subr.mxu0 0.0
    %292 = vmatpush2.msra.mxu0 0.0
    %293 = vmatprep.subr.mxu0 0.0
    %294 = vmatpush2.msra.mxu0 0.0
    %295 = vmatprep.subr.mxu0 0.0
    %296 = vmatpush2.msra.mxu0 0.0
    %297 = vmatprep.subr.mxu0 0.0
    %298 = vmatpush2.msra.mxu0 0.0
    %299 = vmatprep.subr.mxu0 0.0
    %300 = vmatpush2.msra.mxu0 0.0
    %301 = vmatprep.subr.mxu0 0.0
    %302 = vmatpush2.msra.mxu0 0.0
    %303 = vmatprep.subr.mxu0 0.0
    %304 = vmatpush2.msra.mxu0 0.0
    %305 = vmatprep.subr.mxu0 0.0
    %306 = vmatpush2.msra.mxu0 0.0
    %307 = vmatprep.mubr.f32.mxu0 0.0
    %308 = vmatmul.mubr.f32.gmra.mxu0 %v241
    %v309 = vpop.f32.mrf.mxu0
    %v310 = vadd.f32 %v238, %v309
    %v311 = vpop.f32.mrf.mxu0
    %312 = vdwg.mxu0
    %v313 = vmax.f32 %v310, 0.0
    %v314 = vld [vmem:[%s7] sm:$0xff]
    %v315 = vld [vmem:[%s7 + $0x8] sm:$0xff]
    %v316 = vld [vmem:[%s8] sm:$0x1]
    %v318 = vlaneseq
    %v319 = vshrl.u32 %v318, 7
    %v320 = vsub.s32 0, %v319
    %v321 = vrot.slane %v316, %v320
    %vm323 = vcmask 130048
    %v325 = vsel %vm323, %v313, 0
    %327 = vmatprep.subr.mxu0 0.0
    %328 = vmatpush1.msra.mxu0 0.0
    %329 = vmatprep.subr.mxu0 0.0
    %330 = vmatpush1.msra.mxu0 0.0
    %331 = vmatprep.subr.mxu0 0.0
    %332 = vmatpush1.msra.mxu0 0.0
    %333 = vmatprep.subr.mxu0 0.0
    %334 = vmatpush1.msra.mxu0 0.0
    %335 = vmatprep.subr.mxu0 0.0
    %336 = vmatpush1.msra.mxu0 0.0
    %337 = vmatprep.subr.mxu0 0.0
    %338 = vmatpush1.msra.mxu0 0.0
    %339 = vmatprep.subr.mxu0 0.0
    %340 = vmatpush1.msra.mxu0 0.0
    %341 = vmatprep.subr.mxu0 0.0
    %342 = vmatpush1.msra.mxu0 0.0
    %343 = vmatprep.subr.mxu0 0.0
    %344 = vmatpush1.msra.mxu0 0.0
    %345 = vmatprep.subr.mxu0 0.0
    %346 = vmatpush1.msra.mxu0 0.0
    %347 = vmatprep.subr.mxu0 0.0
    %348 = vmatpush1.msra.mxu0 0.0
    %349 = vmatprep.subr.mxu0 0.0
    %350 = vmatpush1.msra.mxu0 0.0
    %351 = vmatprep.subr.mxu0 0.0
    %352 = vmatpush1.msra.mxu0 0.0
    %353 = vmatprep.subr.mxu0 0.0
    %354 = vmatpush1.msra.mxu0 0.0
    %355 = vmatprep.subr.mxu0 0.0
    %356 = vmatpush1.msra.mxu0 %v315
    %357 = vmatprep.subr.mxu0 0.0
    %358 = vmatpush1.msra.mxu0 %v314
    %359 = vmatprep.subr.mxu0 0.0
    %360 = vmatpush2.msra.mxu0 0.0
    %361 = vmatprep.subr.mxu0 0.0
    %362 = vmatpush2.msra.mxu0 0.0
    %363 = vmatprep.subr.mxu0 0.0
    %364 = vmatpush2.msra.mxu0 0.0
    %365 = vmatprep.subr.mxu0 0.0
    %366 = vmatpush2.msra.mxu0 0.0
    %367 = vmatprep.subr.mxu0 0.0
    %368 = vmatpush2.msra.mxu0 0.0
    %369 = vmatprep.subr.mxu0 0.0
    %370 = vmatpush2.msra.mxu0 0.0
    %371 = vmatprep.subr.mxu0 0.0
    %372 = vmatpush2.msra.mxu0 0.0
    %373 = vmatprep.subr.mxu0 0.0
    %374 = vmatpush2.msra.mxu0 0.0
    %375 = vmatprep.subr.mxu0 0.0
    %376 = vmatpush2.msra.mxu0 0.0
    %377 = vmatprep.subr.mxu0 0.0
    %378 = vmatpush2.msra.mxu0 0.0
    %379 = vmatprep.subr.mxu0 0.0
    %380 = vmatpush2.msra.mxu0 0.0
    %381 = vmatprep.subr.mxu0 0.0
    %382 = vmatpush2.msra.mxu0 0.0
    %383 = vmatprep.subr.mxu0 0.0
    %384 = vmatpush2.msra.mxu0 0.0
    %385 = vmatprep.subr.mxu0 0.0
    %386 = vmatpush2.msra.mxu0 0.0
    %387 = vmatprep.subr.mxu0 0.0
    %388 = vmatpush2.msra.mxu0 0.0
    %389 = vmatprep.subr.mxu0 0.0
    %390 = vmatpush2.msra.mxu0 0.0
    %391 = vmatprep.mubr.f32.mxu0 0.0
    %392 = vmatmul.mubr.f32.gmra.mxu0 %v325
    %v393 = vpop.f32.mrf.mxu0
    %v394 = vadd.f32 %v321, %v393
    %v395 = vpop.f32.mrf.mxu0
    %396 = vdwg.mxu0
    %v397 = vmax.f32 %v394, 0.0
    %398 = vrot.lane.b32.xlu0 %v132, 8
    %v399 = vpop.permute.xlu0 %398
    %v400 = vmul.f32 %v132, %v399
    %v401 = vld [vmem:[%s9] sm:$0xff]
    %v402 = vld [vmem:[%s9 + $0x8] sm:$0xff]
    %v403 = vld [vmem:[%s9 + $0x10] sm:$0xff]
    %v404 = vld [vmem:[%s9 + $0x18] sm:$0xff]
    %v405 = vld [vmem:[%s9 + $0x20] sm:$0xff]
    %v406 = vld [vmem:[%s9 + $0x28] sm:$0xff]
    %v407 = vld [vmem:[%s9 + $0x30] sm:$0xff]
    %v408 = vld [vmem:[%s9 + $0x38] sm:$0xff]
    %v409 = vld [vmem:[%s9 + $0x40] sm:$0xff]
    %v410 = vld [vmem:[%s9 + $0x48] sm:$0xff]
    %v411 = vld [vmem:[%s9 + $0x50] sm:$0xff]
    %v412 = vld [vmem:[%s9 + $0x58] sm:$0xff]
    %v413 = vld [vmem:[%s9 + $0x60] sm:$0xff]
    %v414 = vld [vmem:[%s9 + $0x68] sm:$0xff]
    %v415 = vld [vmem:[%s9 + $0x70] sm:$0xff]
    %v416 = vld [vmem:[%s9 + $0x78] sm:$0xff]
    %v417 = vld [vmem:[%s10] sm:$0xff]
    %vm418 = vcmask 64512
    %v420 = vsel %vm418, %v397, 0
    %422 = vmatprep.subr.mxu0 0.0
    %423 = vmatpush1.msra.mxu0 0.0
    %424 = vmatprep.subr.mxu0 0.0
    %425 = vmatpush1.msra.mxu0 0.0
    %426 = vmatprep.subr.mxu0 0.0
    %427 = vmatpush1.msra.mxu0 0.0
    %428 = vmatprep.subr.mxu0 0.0
    %429 = vmatpush1.msra.mxu0 0.0
    %430 = vmatprep.subr.mxu0 0.0
    %431 = vmatpush1.msra.mxu0 0.0
    %432 = vmatprep.subr.mxu0 0.0
    %433 = vmatpush1.msra.mxu0 0.0
    %434 = vmatprep.subr.mxu0 0.0
    %435 = vmatpush1.msra.mxu0 0.0
    %436 = vmatprep.subr.mxu0 0.0
    %437 = vmatpush1.msra.mxu0 0.0
    %438 = vmatprep.subr.mxu0 0.0
    %439 = vmatpush1.msra.mxu0 0.0
    %440 = vmatprep.subr.mxu0 0.0
    %441 = vmatpush1.msra.mxu0 0.0
    %442 = vmatprep.subr.mxu0 0.0
    %443 = vmatpush1.msra.mxu0 0.0
    %444 = vmatprep.subr.mxu0 0.0
    %445 = vmatpush1.msra.mxu0 0.0
    %446 = vmatprep.subr.mxu0 0.0
    %447 = vmatpush1.msra.mxu0 0.0
    %448 = vmatprep.subr.mxu0 0.0
    %449 = vmatpush1.msra.mxu0 0.0
    %450 = vmatprep.subr.mxu0 0.0
    %451 = vmatpush1.msra.mxu0 0.0
    %452 = vmatprep.subr.mxu0 0.0
    %453 = vmatpush1.msra.mxu0 %v417
    %454 = vmatprep.subr.mxu0 0.0
    %455 = vmatpush2.msra.mxu0 0.0
    %456 = vmatprep.subr.mxu0 0.0
    %457 = vmatpush2.msra.mxu0 0.0
    %458 = vmatprep.subr.mxu0 0.0
    %459 = vmatpush2.msra.mxu0 0.0
    %460 = vmatprep.subr.mxu0 0.0
    %461 = vmatpush2.msra.mxu0 0.0
    %462 = vmatprep.subr.mxu0 0.0
    %463 = vmatpush2.msra.mxu0 0.0
    %464 = vmatprep.subr.mxu0 0.0
    %465 = vmatpush2.msra.mxu0 0.0
    %466 = vmatprep.subr.mxu0 0.0
    %467 = vmatpush2.msra.mxu0 0.0
    %468 = vmatprep.subr.mxu0 0.0
    %469 = vmatpush2.msra.mxu0 0.0
    %470 = vmatprep.subr.mxu0 0.0
    %471 = vmatpush2.msra.mxu0 0.0
    %472 = vmatprep.subr.mxu0 0.0
    %473 = vmatpush2.msra.mxu0 0.0
    %474 = vmatprep.subr.mxu0 0.0
    %475 = vmatpush2.msra.mxu0 0.0
    %476 = vmatprep.subr.mxu0 0.0
    %477 = vmatpush2.msra.mxu0 0.0
    %478 = vmatprep.subr.mxu0 0.0
    %479 = vmatpush2.msra.mxu0 0.0
    %480 = vmatprep.subr.mxu0 0.0
    %481 = vmatpush2.msra.mxu0 0.0
    %482 = vmatprep.subr.mxu0 0.0
    %483 = vmatpush2.msra.mxu0 0.0
    %484 = vmatprep.subr.mxu0 0.0
    %485 = vmatpush2.msra.mxu0 0.0
    %486 = vmatprep.mubr.f32.mxu0 0.0
    %487 = vmatmul.mubr.f32.gmra.mxu0 %v420
    %v488 = vpop.f32.mrf.mxu0
    %v489 = vadd.f32 0.0, %v488
    %v490 = vpop.f32.mrf.mxu0
    %491 = vdwg.mxu0
    %492 = vmatprep.subr.mxu0 0.0
    %493 = vmatpush1.msra.mxu0 %v416
    %494 = vmatprep.subr.mxu0 0.0
    %495 = vmatpush1.msra.mxu0 %v415
    %496 = vmatprep.subr.mxu0 0.0
    %497 = vmatpush1.msra.mxu0 %v414
    %498 = vmatprep.subr.mxu0 0.0
    %499 = vmatpush1.msra.mxu0 %v413
    %500 = vmatprep.subr.mxu0 0.0
    %501 = vmatpush1.msra.mxu0 %v412
    %502 = vmatprep.subr.mxu0 0.0
    %503 = vmatpush1.msra.mxu0 %v411
    %504 = vmatprep.subr.mxu0 0.0
    %505 = vmatpush1.msra.mxu0 %v410
    %506 = vmatprep.subr.mxu0 0.0
    %507 = vmatpush1.msra.mxu0 %v409
    %508 = vmatprep.subr.mxu0 0.0
    %509 = vmatpush1.msra.mxu0 %v408
    %510 = vmatprep.subr.mxu0 0.0
    %511 = vmatpush1.msra.mxu0 %v407
    %512 = vmatprep.subr.mxu0 0.0
    %513 = vmatpush1.msra.mxu0 %v406
    %514 = vmatprep.subr.mxu0 0.0
    %515 = vmatpush1.msra.mxu0 %v405
    %516 = vmatprep.subr.mxu0 0.0
    %517 = vmatpush1.msra.mxu0 %v404
    %518 = vmatprep.subr.mxu0 0.0
    %519 = vmatpush1.msra.mxu0 %v403
    %520 = vmatprep.subr.mxu0 0.0
    %521 = vmatpush1.msra.mxu0 %v402
    %522 = vmatprep.subr.mxu0 0.0
    %523 = vmatpush1.msra.mxu0 %v401
    %524 = vmatprep.subr.mxu0 0.0
    %525 = vmatpush2.msra.mxu0 0.0
    %526 = vmatprep.subr.mxu0 0.0
    %527 = vmatpush2.msra.mxu0 0.0
    %528 = vmatprep.subr.mxu0 0.0
    %529 = vmatpush2.msra.mxu0 0.0
    %530 = vmatprep.subr.mxu0 0.0
    %531 = vmatpush2.msra.mxu0 0.0
    %532 = vmatprep.subr.mxu0 0.0
    %533 = vmatpush2.msra.mxu0 0.0
    %534 = vmatprep.subr.mxu0 0.0
    %535 = vmatpush2.msra.mxu0 0.0
    %536 = vmatprep.subr.mxu0 0.0
    %537 = vmatpush2.msra.mxu0 0.0
    %538 = vmatprep.subr.mxu0 0.0
    %539 = vmatpush2.msra.mxu0 0.0
    %540 = vmatprep.subr.mxu0 0.0
    %541 = vmatpush2.msra.mxu0 0.0
    %542 = vmatprep.subr.mxu0 0.0
    %543 = vmatpush2.msra.mxu0 0.0
    %544 = vmatprep.subr.mxu0 0.0
    %545 = vmatpush2.msra.mxu0 0.0
    %546 = vmatprep.subr.mxu0 0.0
    %547 = vmatpush2.msra.mxu0 0.0
    %548 = vmatprep.subr.mxu0 0.0
    %549 = vmatpush2.msra.mxu0 0.0
    %550 = vmatprep.subr.mxu0 0.0
    %551 = vmatpush2.msra.mxu0 0.0
    %552 = vmatprep.subr.mxu0 0.0
    %553 = vmatpush2.msra.mxu0 0.0
    %554 = vmatprep.subr.mxu0 0.0
    %555 = vmatpush2.msra.mxu0 0.0
    %556 = vmatprep.mubr.f32.mxu0 0.0
    %557 = vmatmul.mubr.f32.gmra.mxu0 %v400
    %v558 = vpop.f32.mrf.mxu0
    %v559 = vadd.f32 %v489, %v558
    %v560 = vpop.f32.mrf.mxu0
    %561 = vdwg.mxu0
    %v562 = vld [vmem:[%s11] sm:$0x1]
    %v564 = vlaneseq
    %v565 = vshrl.u32 %v564, 7
    %v566 = vsub.s32 0, %v565
    %v567 = vrot.slane %v562, %v566
    %v569 = vadd.f32 %v559, %v567
    %vm570 = vcmask 39936
    %571 = vst.msk [vmem:[#allocation2] sm:$0xff] %vm570, %v569
    // Predicated region
    $region50: #{tpu_custom_call.1} parent=1 // pred_check
      _
    $region51: #{tpu_custom_call.1} parent=1 // pred_check_branch
      %573 = sbr.rel (0) target = $region53
    $region52: #{tpu_custom_call.1} parent=1 // pred_region
      %s575 = ssub.s32 128, 128
      %576 = vsyncadd [#allocation3], %s575
      %s578 = sshll.u32 [#allocation2], 4
      %s579 = int_to_ptr.vmem [resolvable:$true] %s578
      %581 = dma.vmem_to_hbm [thread:$0]  %s579, 128, %s12, [#allocation3]
    $region53: #{tpu_custom_call.1} parent=1 // pred_fallthru
      _
    // Predicated region
    $region54: #{tpu_custom_call.1} parent=1 // pred_check
      _
    $region55: #{tpu_custom_call.1} parent=1 // pred_check_branch
      %583 = sbr.rel (0) target = $region57
    $region56: #{tpu_custom_call.1} parent=1 // pred_region
      %584 = dma.done [#allocation3], 128
    $region57: #{tpu_custom_call.1} parent=1 // pred_fallthru
      _
    %585 = vsyncpa [#allocation3], 1

</llo_original>
